<compile_context>
chip_gen: v7x
topology: tpu7x:2x2x1
jax: 0.10.0
libtpu: 0.0.40
codegen_flags: <defaults>
</compile_context>

<pallas_src>
import math
from functools import partial

import jax
import jax.numpy as jnp
import numpy as np
from jax import lax
from jax.experimental import pallas as pl
from jax.experimental.pallas import tpu as pltpu


def _round_up(x, m):
    return (x + m - 1) // m * m


def _spp_level_params(H, W, level):
    """Replicates the PyTorch SPPLayer per-level pooling hyper-parameters."""
    kh = math.ceil(H / level)
    kw = math.ceil(W / level)
    sh, sw = kh, kw
    ph = math.floor((kh * level - H + 1) / 2)
    pw = math.floor((kw * level - W + 1) / 2)
    oh = (H + 2 * ph - kh) // sh + 1  # floor formula (ceil_mode=False)
    ow = (W + 2 * pw - kw) // sw + 1
    return kh, kw, sh, sw, ph, pw, oh, ow


def _build_pyramid_tables(H, W, num_levels):
    """Static per-cell windows -> lane masks (maxpool) + pooling matrix (avgpool).

    Max-pool padding in PyTorch is -inf padding, so out-of-bounds positions
    never win -> the mask only covers the valid (clipped) window.
    Avg-pool uses count_include_pad=True (PyTorch default) -> weights 1/(kh*kw)
    over valid positions (padded zeros contribute 0 to the sum anyway).
    """
    cells = []        # (h0, h1, w0, w1, kernel_area)
    level_sizes = []
    for lvl in range(1, num_levels + 1):
        kh, kw, sh, sw, ph, pw, oh, ow = _spp_level_params(H, W, lvl)
        level_sizes.append(oh * ow)
        for r in range(oh):
            for c in range(ow):
                h0 = max(0, r * sh - ph)
                h1 = min(H, r * sh - ph + kh)
                w0 = max(0, c * sw - pw)
                w1 = min(W, c * sw - pw + kw)
                cells.append((h0, h1, w0, w1, kh * kw))
    total = len(cells)
    mask = np.zeros((total, H * W), np.float32)   # membership mask per cell
    pmat = np.zeros((H * W, total), np.float32)   # avg-pool weight matrix
    for j, (h0, h1, w0, w1, area) in enumerate(cells):
        for h in range(h0, h1):
            mask[j, h * W + w0:h * W + w1] = 1.0
            pmat[h * W + w0:h * W + w1, j] = 1.0 / area
    return mask, pmat, total, level_sizes


def _spp_max_kernel(mask_ref, x_ref, o_ref, *, total_cells):
    """Max pooling of all pyramid cells for a block of (N*C) rows.

    x_ref: (BR, H*W) lane-dense block.  mask_ref: (total_cells, H*W) static masks.
    Per cell: full-width VPU select + one lane reduction; all cell columns are
    assembled in registers and stored with a single write.
    """
    x = x_ref[...].astype(jnp.float32)
    cols = []
    for j in range(total_cells):
        m = mask_ref[j:j + 1, :]                                   # (1, HW)
        vals = jnp.where(m > 0.5, x, jnp.float32(-jnp.inf))        # VPU select
        cols.append(jnp.max(vals, axis=1, keepdims=True))          # lane reduce
    o_ref[...] = jnp.concatenate(cols, axis=1).astype(o_ref.dtype)


def _spp_avg_kernel(p_ref, x_ref, o_ref):
    """Average pooling of the whole pyramid as one MXU matmul.

    (BR, H*W) @ (H*W, total_cells) -> (BR, total_cells), f32 accumulation.
    """
    o_ref[...] = jnp.dot(
        x_ref[...], p_ref[...],
        preferred_element_type=jnp.float32,
        precision=jax.lax.Precision.HIGHEST,
    ).astype(o_ref.dtype)


def spp_layer(x, num_levels, pool_type="maxpool", block_rows=512):
    """JAX wrapper: lane-dense Pallas kernel + cheap reshape glue for ordering."""
    N, C, H, W = x.shape
    HW = H * W
    mask, pmat, total, level_sizes = _build_pyramid_tables(H, W, num_levels)

    rows = N * C
    x_flat = x.reshape(rows, HW)                    # lane dim = H*W (>=128 typical)
    br = _round_up(min(block_rows, _round_up(rows, 8)), 8)
    padded = _round_up(rows, br)
    if padded != rows:
        x_flat = jnp.pad(x_flat, ((0, padded - rows), (0, 0)))

    if pool_type == "maxpool":
        aux = jnp.asarray(mask)
        kernel = partial(_spp_max_kernel, total_cells=total)
        aux_spec = pl.BlockSpec((total, HW), lambda i: (0, 0))
    else:
        aux = jnp.asarray(pmat)
        kernel = _spp_avg_kernel
        aux_spec = pl.BlockSpec((HW, total), lambda i: (0, 0))

    out = pl.pallas_call(
        kernel,
        grid=(padded // br,),
        out_shape=jax.ShapeDtypeStruct((padded, total), x.dtype),
        in_specs=[
            aux_spec,                                        # small, resident
            pl.BlockSpec((br, HW), lambda i: (i, 0)),        # row-block of x
        ],
        out_specs=pl.BlockSpec((br, total), lambda i: (i, 0)),
        compiler_params=pltpu.CompilerParams(
            dimension_semantics=("parallel",),               # shards across v7x TCs
        ),
    )(aux, x_flat)

    # Recover PyTorch ordering: per level, pooled.view(num, -1) is channel-major
    # then (r, c)-major; concat levels along the feature dim.
    out = out[:rows].reshape(N, C, total)
    feats = []
    off = 0
    for sz in level_sizes:
        feats.append(out[:, :, off:off + sz].reshape(N, -1))
        off += sz
    return jnp.concatenate(feats, axis=1)


def spp_reference(x, num_levels, pool_type="maxpool"):
    """Independent pure-JAX reference using lax.reduce_window."""
    N, C, H, W = x.shape
    feats = []
    for lvl in range(1, num_levels + 1):
        kh, kw, sh, sw, ph, pw, _, _ = _spp_level_params(H, W, lvl)
        pad = [(0, 0), (0, 0), (ph, ph), (pw, pw)]
        if pool_type == "maxpool":
            pooled = lax.reduce_window(
                x, -jnp.inf, lax.max, (1, 1, kh, kw), (1, 1, sh, sw), pad
            )
        else:
            pooled = (
                lax.reduce_window(
                    x, 0.0, lax.add, (1, 1, kh, kw), (1, 1, sh, sw), pad
                )
                / (kh * kw)
            )
        feats.append(pooled.reshape(N, -1))
    return jnp.concatenate(feats, axis=1)


if __name__ == "__main__":
    key = jax.random.PRNGKey(0)
    N, C, H, W = 2, 4, 16, 16
    num_levels = 3

    x = jax.random.normal(key, (N, C, H, W), dtype=jnp.float32)

    # maxpool (module default)
    out_max = jax.block_until_ready(spp_layer(x, num_levels, pool_type="maxpool"))
    ref_max = jax.block_until_ready(spp_reference(x, num_levels, pool_type="maxpool"))
    assert out_max.shape == (N, C * (1 + 4 + 9)), out_max.shape
    np.testing.assert_allclose(
        np.asarray(out_max), np.asarray(ref_max), rtol=1e-6, atol=1e-6
    )

    # avgpool branch (MXU matmul path)
    out_avg = jax.block_until_ready(spp_layer(x, num_levels, pool_type="avgpool"))
    ref_avg = jax.block_until_ready(spp_reference(x, num_levels, pool_type="avgpool"))
    np.testing.assert_allclose(
        np.asarray(out_avg), np.asarray(ref_avg), rtol=1e-5, atol=1e-5
    )

    print("KERNEL_OK")
</pallas_src>

<mosaic_0001>
module attributes {stable_mosaic.version = 11 : i64} {
  func.func @_spp_max_kernel(%arg0: i32, %arg1: memref<14x256xf32, #tpu.memory_space<vmem>>, %arg2: memref<8x256xf32, #tpu.memory_space<vmem>>, %arg3: memref<8x14xf32, #tpu.memory_space<vmem>>) attributes {dimension_semantics = [#tpu.dimension_semantics<parallel>], iteration_bounds = array<i64: 1>, scalar_prefetch = 0 : i64, scratch_operands = 0 : i64, tpu.core_type = #tpu.core_type<tc>, window_params = [{pipeline_mode = #tpu.pipeline_mode<synchronous>, transform_indices = @transform_0, window_bounds = array<i64: 14, 256>}, {transform_indices = @transform_1, window_bounds = array<i64: 8, 256>}, {transform_indices = @transform_2, window_bounds = array<i64: 8, 14>}]} {
    %c0 = arith.constant 0 : index
    %c0_0 = arith.constant 0 : index
    %0 = vector.load %arg2[%c0, %c0_0] : memref<8x256xf32, #tpu.memory_space<vmem>>, vector<8x256xf32>
    %c0_1 = arith.constant 0 : index
    %c0_2 = arith.constant 0 : index
    %1 = vector.load %arg1[%c0_1, %c0_2] : memref<14x256xf32, #tpu.memory_space<vmem>>, vector<1x256xf32>
    %cst = arith.constant 5.000000e-01 : f32
    %2 = vector.broadcast %cst : f32 to vector<1x256xf32>
    %3 = arith.cmpf ogt, %1, %2 : vector<1x256xf32>
    %cst_3 = arith.constant 0xFF800000 : f32
    %4 = vector.shape_cast %3 : vector<1x256xi1> to vector<1x256xi1>
    %5 = vector.broadcast %4 : vector<1x256xi1> to vector<8x256xi1>
    %6 = vector.broadcast %cst_3 : f32 to vector<8x256xf32>
    %7 = arith.select %5, %0, %6 : vector<8x256xi1>, vector<8x256xf32>
    %cst_4 = arith.constant dense<0xFF800000> : vector<8xf32>
    %8 = vector.multi_reduction <maximumf>, %7, %cst_4 [1] : vector<8x256xf32> to vector<8xf32>
    %9 = vector.shape_cast %8 : vector<8xf32> to vector<8x1xf32>
    %c1 = arith.constant 1 : index
    %c0_5 = arith.constant 0 : index
    %10 = vector.load %arg1[%c1, %c0_5] : memref<14x256xf32, #tpu.memory_space<vmem>>, vector<1x256xf32>
    %cst_6 = arith.constant 5.000000e-01 : f32
    %11 = vector.broadcast %cst_6 : f32 to vector<1x256xf32>
    %12 = arith.cmpf ogt, %10, %11 : vector<1x256xf32>
    %cst_7 = arith.constant 0xFF800000 : f32
    %13 = vector.shape_cast %12 : vector<1x256xi1> to vector<1x256xi1>
    %14 = vector.broadcast %13 : vector<1x256xi1> to vector<8x256xi1>
    %15 = vector.broadcast %cst_7 : f32 to vector<8x256xf32>
    %16 = arith.select %14, %0, %15 : vector<8x256xi1>, vector<8x256xf32>
    %cst_8 = arith.constant dense<0xFF800000> : vector<8xf32>
    %17 = vector.multi_reduction <maximumf>, %16, %cst_8 [1] : vector<8x256xf32> to vector<8xf32>
    %18 = vector.shape_cast %17 : vector<8xf32> to vector<8x1xf32>
    %c2 = arith.constant 2 : index
    %c0_9 = arith.constant 0 : index
    %19 = vector.load %arg1[%c2, %c0_9] : memref<14x256xf32, #tpu.memory_space<vmem>>, vector<1x256xf32>
    %cst_10 = arith.constant 5.000000e-01 : f32
    %20 = vector.broadcast %cst_10 : f32 to vector<1x256xf32>
    %21 = arith.cmpf ogt, %19, %20 : vector<1x256xf32>
    %cst_11 = arith.constant 0xFF800000 : f32
    %22 = vector.shape_cast %21 : vector<1x256xi1> to vector<1x256xi1>
    %23 = vector.broadcast %22 : vector<1x256xi1> to vector<8x256xi1>
    %24 = vector.broadcast %cst_11 : f32 to vector<8x256xf32>
    %25 = arith.select %23, %0, %24 : vector<8x256xi1>, vector<8x256xf32>
    %cst_12 = arith.constant dense<0xFF800000> : vector<8xf32>
    %26 = vector.multi_reduction <maximumf>, %25, %cst_12 [1] : vector<8x256xf32> to vector<8xf32>
    %27 = vector.shape_cast %26 : vector<8xf32> to vector<8x1xf32>
    %c3 = arith.constant 3 : index
    %c0_13 = arith.constant 0 : index
    %28 = vector.load %arg1[%c3, %c0_13] : memref<14x256xf32, #tpu.memory_space<vmem>>, vector<1x256xf32>
    %cst_14 = arith.constant 5.000000e-01 : f32
    %29 = vector.broadcast %cst_14 : f32 to vector<1x256xf32>
    %30 = arith.cmpf ogt, %28, %29 : vector<1x256xf32>
    %cst_15 = arith.constant 0xFF800000 : f32
    %31 = vector.shape_cast %30 : vector<1x256xi1> to vector<1x256xi1>
    %32 = vector.broadcast %31 : vector<1x256xi1> to vector<8x256xi1>
    %33 = vector.broadcast %cst_15 : f32 to vector<8x256xf32>
    %34 = arith.select %32, %0, %33 : vector<8x256xi1>, vector<8x256xf32>
    %cst_16 = arith.constant dense<0xFF800000> : vector<8xf32>
    %35 = vector.multi_reduction <maximumf>, %34, %cst_16 [1] : vector<8x256xf32> to vector<8xf32>
    %36 = vector.shape_cast %35 : vector<8xf32> to vector<8x1xf32>
    %c4 = arith.constant 4 : index
    %c0_17 = arith.constant 0 : index
    %37 = vector.load %arg1[%c4, %c0_17] : memref<14x256xf32, #tpu.memory_space<vmem>>, vector<1x256xf32>
    %cst_18 = arith.constant 5.000000e-01 : f32
    %38 = vector.broadcast %cst_18 : f32 to vector<1x256xf32>
    %39 = arith.cmpf ogt, %37, %38 : vector<1x256xf32>
    %cst_19 = arith.constant 0xFF800000 : f32
    %40 = vector.shape_cast %39 : vector<1x256xi1> to vector<1x256xi1>
    %41 = vector.broadcast %40 : vector<1x256xi1> to vector<8x256xi1>
    %42 = vector.broadcast %cst_19 : f32 to vector<8x256xf32>
    %43 = arith.select %41, %0, %42 : vector<8x256xi1>, vector<8x256xf32>
    %cst_20 = arith.constant dense<0xFF800000> : vector<8xf32>
    %44 = vector.multi_reduction <maximumf>, %43, %cst_20 [1] : vector<8x256xf32> to vector<8xf32>
    %45 = vector.shape_cast %44 : vector<8xf32> to vector<8x1xf32>
    %c5 = arith.constant 5 : index
    %c0_21 = arith.constant 0 : index
    %46 = vector.load %arg1[%c5, %c0_21] : memref<14x256xf32, #tpu.memory_space<vmem>>, vector<1x256xf32>
    %cst_22 = arith.constant 5.000000e-01 : f32
    %47 = vector.broadcast %cst_22 : f32 to vector<1x256xf32>
    %48 = arith.cmpf ogt, %46, %47 : vector<1x256xf32>
    %cst_23 = arith.constant 0xFF800000 : f32
    %49 = vector.shape_cast %48 : vector<1x256xi1> to vector<1x256xi1>
    %50 = vector.broadcast %49 : vector<1x256xi1> to vector<8x256xi1>
    %51 = vector.broadcast %cst_23 : f32 to vector<8x256xf32>
    %52 = arith.select %50, %0, %51 : vector<8x256xi1>, vector<8x256xf32>
    %cst_24 = arith.constant dense<0xFF800000> : vector<8xf32>
    %53 = vector.multi_reduction <maximumf>, %52, %cst_24 [1] : vector<8x256xf32> to vector<8xf32>
    %54 = vector.shape_cast %53 : vector<8xf32> to vector<8x1xf32>
    %c6 = arith.constant 6 : index
    %c0_25 = arith.constant 0 : index
    %55 = vector.load %arg1[%c6, %c0_25] : memref<14x256xf32, #tpu.memory_space<vmem>>, vector<1x256xf32>
    %cst_26 = arith.constant 5.000000e-01 : f32
    %56 = vector.broadcast %cst_26 : f32 to vector<1x256xf32>
    %57 = arith.cmpf ogt, %55, %56 : vector<1x256xf32>
    %cst_27 = arith.constant 0xFF800000 : f32
    %58 = vector.shape_cast %57 : vector<1x256xi1> to vector<1x256xi1>
    %59 = vector.broadcast %58 : vector<1x256xi1> to vector<8x256xi1>
    %60 = vector.broadcast %cst_27 : f32 to vector<8x256xf32>
    %61 = arith.select %59, %0, %60 : vector<8x256xi1>, vector<8x256xf32>
    %cst_28 = arith.constant dense<0xFF800000> : vector<8xf32>
    %62 = vector.multi_reduction <maximumf>, %61, %cst_28 [1] : vector<8x256xf32> to vector<8xf32>
    %63 = vector.shape_cast %62 : vector<8xf32> to vector<8x1xf32>
    %c7 = arith.constant 7 : index
    %c0_29 = arith.constant 0 : index
    %64 = vector.load %arg1[%c7, %c0_29] : memref<14x256xf32, #tpu.memory_space<vmem>>, vector<1x256xf32>
    %cst_30 = arith.constant 5.000000e-01 : f32
    %65 = vector.broadcast %cst_30 : f32 to vector<1x256xf32>
    %66 = arith.cmpf ogt, %64, %65 : vector<1x256xf32>
    %cst_31 = arith.constant 0xFF800000 : f32
    %67 = vector.shape_cast %66 : vector<1x256xi1> to vector<1x256xi1>
    %68 = vector.broadcast %67 : vector<1x256xi1> to vector<8x256xi1>
    %69 = vector.broadcast %cst_31 : f32 to vector<8x256xf32>
    %70 = arith.select %68, %0, %69 : vector<8x256xi1>, vector<8x256xf32>
    %cst_32 = arith.constant dense<0xFF800000> : vector<8xf32>
    %71 = vector.multi_reduction <maximumf>, %70, %cst_32 [1] : vector<8x256xf32> to vector<8xf32>
    %72 = vector.shape_cast %71 : vector<8xf32> to vector<8x1xf32>
    %c8 = arith.constant 8 : index
    %c0_33 = arith.constant 0 : index
    %73 = vector.load %arg1[%c8, %c0_33] : memref<14x256xf32, #tpu.memory_space<vmem>>, vector<1x256xf32>
    %cst_34 = arith.constant 5.000000e-01 : f32
    %74 = vector.broadcast %cst_34 : f32 to vector<1x256xf32>
    %75 = arith.cmpf ogt, %73, %74 : vector<1x256xf32>
    %cst_35 = arith.constant 0xFF800000 : f32
    %76 = vector.shape_cast %75 : vector<1x256xi1> to vector<1x256xi1>
    %77 = vector.broadcast %76 : vector<1x256xi1> to vector<8x256xi1>
    %78 = vector.broadcast %cst_35 : f32 to vector<8x256xf32>
    %79 = arith.select %77, %0, %78 : vector<8x256xi1>, vector<8x256xf32>
    %cst_36 = arith.constant dense<0xFF800000> : vector<8xf32>
    %80 = vector.multi_reduction <maximumf>, %79, %cst_36 [1] : vector<8x256xf32> to vector<8xf32>
    %81 = vector.shape_cast %80 : vector<8xf32> to vector<8x1xf32>
    %c9 = arith.constant 9 : index
    %c0_37 = arith.constant 0 : index
    %82 = vector.load %arg1[%c9, %c0_37] : memref<14x256xf32, #tpu.memory_space<vmem>>, vector<1x256xf32>
    %cst_38 = arith.constant 5.000000e-01 : f32
    %83 = vector.broadcast %cst_38 : f32 to vector<1x256xf32>
    %84 = arith.cmpf ogt, %82, %83 : vector<1x256xf32>
    %cst_39 = arith.constant 0xFF800000 : f32
    %85 = vector.shape_cast %84 : vector<1x256xi1> to vector<1x256xi1>
    %86 = vector.broadcast %85 : vector<1x256xi1> to vector<8x256xi1>
    %87 = vector.broadcast %cst_39 : f32 to vector<8x256xf32>
    %88 = arith.select %86, %0, %87 : vector<8x256xi1>, vector<8x256xf32>
    %cst_40 = arith.constant dense<0xFF800000> : vector<8xf32>
    %89 = vector.multi_reduction <maximumf>, %88, %cst_40 [1] : vector<8x256xf32> to vector<8xf32>
    %90 = vector.shape_cast %89 : vector<8xf32> to vector<8x1xf32>
    %c10 = arith.constant 10 : index
    %c0_41 = arith.constant 0 : index
    %91 = vector.load %arg1[%c10, %c0_41] : memref<14x256xf32, #tpu.memory_space<vmem>>, vector<1x256xf32>
    %cst_42 = arith.constant 5.000000e-01 : f32
    %92 = vector.broadcast %cst_42 : f32 to vector<1x256xf32>
    %93 = arith.cmpf ogt, %91, %92 : vector<1x256xf32>
    %cst_43 = arith.constant 0xFF800000 : f32
    %94 = vector.shape_cast %93 : vector<1x256xi1> to vector<1x256xi1>
    %95 = vector.broadcast %94 : vector<1x256xi1> to vector<8x256xi1>
    %96 = vector.broadcast %cst_43 : f32 to vector<8x256xf32>
    %97 = arith.select %95, %0, %96 : vector<8x256xi1>, vector<8x256xf32>
    %cst_44 = arith.constant dense<0xFF800000> : vector<8xf32>
    %98 = vector.multi_reduction <maximumf>, %97, %cst_44 [1] : vector<8x256xf32> to vector<8xf32>
    %99 = vector.shape_cast %98 : vector<8xf32> to vector<8x1xf32>
    %c11 = arith.constant 11 : index
    %c0_45 = arith.constant 0 : index
    %100 = vector.load %arg1[%c11, %c0_45] : memref<14x256xf32, #tpu.memory_space<vmem>>, vector<1x256xf32>
    %cst_46 = arith.constant 5.000000e-01 : f32
    %101 = vector.broadcast %cst_46 : f32 to vector<1x256xf32>
    %102 = arith.cmpf ogt, %100, %101 : vector<1x256xf32>
    %cst_47 = arith.constant 0xFF800000 : f32
    %103 = vector.shape_cast %102 : vector<1x256xi1> to vector<1x256xi1>
    %104 = vector.broadcast %103 : vector<1x256xi1> to vector<8x256xi1>
    %105 = vector.broadcast %cst_47 : f32 to vector<8x256xf32>
    %106 = arith.select %104, %0, %105 : vector<8x256xi1>, vector<8x256xf32>
    %cst_48 = arith.constant dense<0xFF800000> : vector<8xf32>
    %107 = vector.multi_reduction <maximumf>, %106, %cst_48 [1] : vector<8x256xf32> to vector<8xf32>
    %108 = vector.shape_cast %107 : vector<8xf32> to vector<8x1xf32>
    %c12 = arith.constant 12 : index
    %c0_49 = arith.constant 0 : index
    %109 = vector.load %arg1[%c12, %c0_49] : memref<14x256xf32, #tpu.memory_space<vmem>>, vector<1x256xf32>
    %cst_50 = arith.constant 5.000000e-01 : f32
    %110 = vector.broadcast %cst_50 : f32 to vector<1x256xf32>
    %111 = arith.cmpf ogt, %109, %110 : vector<1x256xf32>
    %cst_51 = arith.constant 0xFF800000 : f32
    %112 = vector.shape_cast %111 : vector<1x256xi1> to vector<1x256xi1>
    %113 = vector.broadcast %112 : vector<1x256xi1> to vector<8x256xi1>
    %114 = vector.broadcast %cst_51 : f32 to vector<8x256xf32>
    %115 = arith.select %113, %0, %114 : vector<8x256xi1>, vector<8x256xf32>
    %cst_52 = arith.constant dense<0xFF800000> : vector<8xf32>
    %116 = vector.multi_reduction <maximumf>, %115, %cst_52 [1] : vector<8x256xf32> to vector<8xf32>
    %117 = vector.shape_cast %116 : vector<8xf32> to vector<8x1xf32>
    %c13 = arith.constant 13 : index
    %c0_53 = arith.constant 0 : index
    %118 = vector.load %arg1[%c13, %c0_53] : memref<14x256xf32, #tpu.memory_space<vmem>>, vector<1x256xf32>
    %cst_54 = arith.constant 5.000000e-01 : f32
    %119 = vector.broadcast %cst_54 : f32 to vector<1x256xf32>
    %120 = arith.cmpf ogt, %118, %119 : vector<1x256xf32>
    %cst_55 = arith.constant 0xFF800000 : f32
    %121 = vector.shape_cast %120 : vector<1x256xi1> to vector<1x256xi1>
    %122 = vector.broadcast %121 : vector<1x256xi1> to vector<8x256xi1>
    %123 = vector.broadcast %cst_55 : f32 to vector<8x256xf32>
    %124 = arith.select %122, %0, %123 : vector<8x256xi1>, vector<8x256xf32>
    %cst_56 = arith.constant dense<0xFF800000> : vector<8xf32>
    %125 = vector.multi_reduction <maximumf>, %124, %cst_56 [1] : vector<8x256xf32> to vector<8xf32>
    %126 = vector.shape_cast %125 : vector<8xf32> to vector<8x1xf32>
    %127 = tpu.concatenate %9, %18, %27, %36, %45, %54, %63, %72, %81, %90, %99, %108, %117, %126 in 1 : vector<8x1xf32>, vector<8x1xf32>, vector<8x1xf32>, vector<8x1xf32>, vector<8x1xf32>, vector<8x1xf32>, vector<8x1xf32>, vector<8x1xf32>, vector<8x1xf32>, vector<8x1xf32>, vector<8x1xf32>, vector<8x1xf32>, vector<8x1xf32>, vector<8x1xf32> -> vector<8x14xf32>
    %c0_57 = arith.constant 0 : index
    %c0_58 = arith.constant 0 : index
    %128 = vector.load %arg3[%c0_57, %c0_58] : memref<8x14xf32, #tpu.memory_space<vmem>>, vector<8x14xf32>
    tpu.vector_store %arg3[%c0_57, %c0_58], %127 {strides = array<i32>} : memref<8x14xf32, #tpu.memory_space<vmem>>, vector<8x14xf32>,
    return
  }
  func.func @transform_0(%arg0: i32) -> (i32, i32) {
    %c0_i32 = arith.constant 0 : i32
    %c0_i32_0 = arith.constant 0 : i32
    %c0_i32_1 = arith.constant 0 : i32
    return %c0_i32, %c0_i32_0 : i32, i32
  }
  func.func @transform_1(%arg0: i32) -> (i32, i32) {
    %c0_i32 = arith.constant 0 : i32
    %c0_i32_0 = arith.constant 0 : i32
    return %arg0, %c0_i32 : i32, i32
  }
  func.func @transform_2(%arg0: i32) -> (i32, i32) {
    %c0_i32 = arith.constant 0 : i32
    %c0_i32_0 = arith.constant 0 : i32
    return %arg0, %c0_i32 : i32, i32
  }
}

</mosaic_0001>

<llo_original>
// kernel: tpu_custom_call.1
$region0: #{tpu_custom_call.1}
  #allocation0 [shape = 'u32[]', space=smem, size = 0x4, offset = 0x4, fixed_abs, tag = 'smem constant byte address 0x4 - core index']
  #allocation1 [shape = 'u32[144,128]{1,0:T(1,128)}', space=vmem, size = 0x12000, scoped, tag = 'internal scratch']
  %s0 = inlined_call_operand.hbm [shape: f32[14,256], index: 0, kind: input, shape index: {}]
  %s1 = inlined_call_operand.hbm [shape: f32[8,256], index: 1, kind: input, shape index: {}]
  %s2 = inlined_call_operand.hbm [shape: f32[8,14], index: 2, kind: output, shape index: {}]
  %s3 = sld [smem:[#allocation0]]
  $region26: #{tpu_custom_call.1} parent=0
    _
  %s5 = ssub.s32 1, %s3
  %s6 = scalar_select 0, %s5, %s3
  $region1: #{tpu_custom_call.1} parent=0
    #allocation2 [shape = 'u8[16384]{0}', space=vmem, size = 0x4000, scoped, tag = 'input window, operand 0, single buffered']
    #allocation3 [shape = 's32[1]{0}', space=sflag, size = 0x4, scoped, tag = 'scoped memory for tpu_custom_call.1']
    #allocation4 [shape = 's32[1]{0}', space=sflag, size = 0x4, scoped, tag = 'scoped memory for tpu_custom_call.1']
    #allocation5 [shape = 'u8[8192]{0}', space=vmem, size = 0x2000, scoped, tag = 'input window, operand 1, single buffered']
    #allocation6 [shape = 's32[1]{0}', space=sflag, size = 0x4, scoped, tag = 'scoped memory for tpu_custom_call.1']
    #allocation7 [shape = 'u8[4096]{0}', space=vmem, size = 0x1000, scoped, tag = 'output window, operand 0, single buffered']
    %7 = vsyncpa [#allocation3], 0
    %8 = vsyncpa [#allocation6], 0
    %9 = vsyncpa [#allocation4], 0
    // Predicated region
    $region2: #{tpu_custom_call.1} parent=1 // pred_check
      _
    $region3: #{tpu_custom_call.1} parent=1 // pred_check_branch
      %11 = sbr.rel (0) target = $region5
    $region4: #{tpu_custom_call.1} parent=1 // pred_region
      %s13 = ssub.s32 512, 512
      %14 = vsyncadd [#allocation3], %s13
      %s15 = sshll.u32 [#allocation2], 4
      %s16 = int_to_ptr.vmem [resolvable:$true] %s15
      %21 = dma.hbm_to_vmem [thread:$0]  %s0, 512, %s16, [#allocation3], 256, 256, 16
    $region5: #{tpu_custom_call.1} parent=1 // pred_fallthru
      _
    // Predicated region
    $region6: #{tpu_custom_call.1} parent=1 // pred_check
      _
    $region7: #{tpu_custom_call.1} parent=1 // pred_check_branch
      %23 = sbr.rel (0) target = $region9
    $region8: #{tpu_custom_call.1} parent=1 // pred_region
      %s25 = ssub.s32 256, 256
      %26 = vsyncadd [#allocation6], %s25
      %s28 = sshll.u32 [#allocation5], 4
      %s29 = int_to_ptr.vmem [resolvable:$true] %s28
      %31 = dma.hbm_to_vmem [thread:$0]  %s1, 256, %s29, [#allocation6]
    $region9: #{tpu_custom_call.1} parent=1 // pred_fallthru
      _
    // Predicated region
    $region10: #{tpu_custom_call.1} parent=1 // pred_check
      _
    $region11: #{tpu_custom_call.1} parent=1 // pred_check_branch
      %33 = sbr.rel (0) target = $region13
    $region12: #{tpu_custom_call.1} parent=1 // pred_region
      %34 = dma.done [#allocation3], 512
    $region13: #{tpu_custom_call.1} parent=1 // pred_fallthru
      _
    // Predicated region
    $region14: #{tpu_custom_call.1} parent=1 // pred_check
      _
    $region15: #{tpu_custom_call.1} parent=1 // pred_check_branch
      %36 = sbr.rel (0) target = $region17
    $region16: #{tpu_custom_call.1} parent=1 // pred_region
      %37 = dma.done [#allocation6], 256
    $region17: #{tpu_custom_call.1} parent=1 // pred_fallthru
      _
    %v38 = vld [vmem:[#allocation5] sm:$0xff]
    %v39 = vld [vmem:[#allocation5 + $0x8] sm:$0xff]
    %v40 = vld [vmem:[#allocation2] ss:$8 sm:$0x3]
    %vm41 = vcmp.gt.f32.partialorder %v40, 0.5
    %v42 = vsel %vm41, 1, 0
    %v43 = vlaneseq
    %v44 = vshrl.u32 %v43, 7
    %v45 = vsub.s32 0, %v44
    %v46 = vrot.slane %v42, %v45
    %v47 = vlaneseq
    %v48 = vshrl.u32 %v47, 7
    %v49 = vsub.s32 1, %v48
    %v50 = vrot.slane %v42, %v49
    %vm51 = vcmp.eq.s32.totalorder %v46, 1
    %vm52 = vcmp.eq.s32.totalorder %v50, 1
    %v53 = vsel %vm51, %v38, -inf
    %v54 = vsel %vm52, %v39, -inf
    %v55 = vmax.f32 %v53, %v54
    %56 = vmax.xlane.f32.xlu0 %v55
    %v57 = vpop.xlane.xlu0 %56
    %s58 = scalar_lea.vmem [#allocation2], 1
    %v59 = vld [vmem:[%s58] ss:$8 sm:$0x3]
    %vm60 = vcmp.gt.f32.partialorder %v59, 0.5
    %v61 = vsel %vm60, 1, 0
    %v62 = vlaneseq
    %v63 = vshrl.u32 %v62, 7
    %v64 = vsub.s32 0, %v63
    %v65 = vrot.slane %v61, %v64
    %v66 = vlaneseq
    %v67 = vshrl.u32 %v66, 7
    %v68 = vsub.s32 1, %v67
    %v69 = vrot.slane %v61, %v68
    %vm70 = vcmp.eq.s32.totalorder %v65, 1
    %vm71 = vcmp.eq.s32.totalorder %v69, 1
    %v72 = vsel %vm70, %v38, -inf
    %v73 = vsel %vm71, %v39, -inf
    %v74 = vmax.f32 %v72, %v73
    %75 = vmax.xlane.f32.xlu0 %v74
    %v76 = vpop.xlane.xlu0 %75
    %s77 = scalar_lea.vmem [#allocation2], 2
    %v78 = vld [vmem:[%s77] ss:$8 sm:$0x3]
    %vm79 = vcmp.gt.f32.partialorder %v78, 0.5
    %v80 = vsel %vm79, 1, 0
    %v81 = vlaneseq
    %v82 = vshrl.u32 %v81, 7
    %v83 = vsub.s32 0, %v82
    %v84 = vrot.slane %v80, %v83
    %v85 = vlaneseq
    %v86 = vshrl.u32 %v85, 7
    %v87 = vsub.s32 1, %v86
    %v88 = vrot.slane %v80, %v87
    %vm89 = vcmp.eq.s32.totalorder %v84, 1
    %vm90 = vcmp.eq.s32.totalorder %v88, 1
    %v91 = vsel %vm89, %v38, -inf
    %v92 = vsel %vm90, %v39, -inf
    %v93 = vmax.f32 %v91, %v92
    %94 = vmax.xlane.f32.xlu0 %v93
    %v95 = vpop.xlane.xlu0 %94
    %s96 = scalar_lea.vmem [#allocation2], 3
    %v97 = vld [vmem:[%s96] ss:$8 sm:$0x3]
    %vm98 = vcmp.gt.f32.partialorder %v97, 0.5
    %v99 = vsel %vm98, 1, 0
    %v100 = vlaneseq
    %v101 = vshrl.u32 %v100, 7
    %v102 = vsub.s32 0, %v101
    %v103 = vrot.slane %v99, %v102
    %v104 = vlaneseq
    %v105 = vshrl.u32 %v104, 7
    %v106 = vsub.s32 1, %v105
    %v107 = vrot.slane %v99, %v106
    %vm108 = vcmp.eq.s32.totalorder %v103, 1
    %vm109 = vcmp.eq.s32.totalorder %v107, 1
    %v110 = vsel %vm108, %v38, -inf
    %v111 = vsel %vm109, %v39, -inf
    %v112 = vmax.f32 %v110, %v111
    %113 = vmax.xlane.f32.xlu0 %v112
    %v114 = vpop.xlane.xlu0 %113
    %s115 = scalar_lea.vmem [#allocation2], 4
    %v116 = vld [vmem:[%s115] ss:$8 sm:$0x3]
    %vm117 = vcmp.gt.f32.partialorder %v116, 0.5
    %v118 = vsel %vm117, 1, 0
    %v119 = vlaneseq
    %v120 = vshrl.u32 %v119, 7
    %v121 = vsub.s32 0, %v120
    %v122 = vrot.slane %v118, %v121
    %v123 = vlaneseq
    %v124 = vshrl.u32 %v123, 7
    %v125 = vsub.s32 1, %v124
    %v126 = vrot.slane %v118, %v125
    %vm127 = vcmp.eq.s32.totalorder %v122, 1
    %vm128 = vcmp.eq.s32.totalorder %v126, 1
    %v129 = vsel %vm127, %v38, -inf
    %v130 = vsel %vm128, %v39, -inf
    %v131 = vmax.f32 %v129, %v130
    %132 = vmax.xlane.f32.xlu0 %v131
    %v133 = vpop.xlane.xlu0 %132
    %s134 = scalar_lea.vmem [#allocation2], 5
    %v135 = vld [vmem:[%s134] ss:$8 sm:$0x3]
    %vm136 = vcmp.gt.f32.partialorder %v135, 0.5
    %v137 = vsel %vm136, 1, 0
    %v138 = vlaneseq
    %v139 = vshrl.u32 %v138, 7
    %v140 = vsub.s32 0, %v139
    %v141 = vrot.slane %v137, %v140
    %v142 = vlaneseq
    %v143 = vshrl.u32 %v142, 7
    %v144 = vsub.s32 1, %v143
    %v145 = vrot.slane %v137, %v144
    %vm146 = vcmp.eq.s32.totalorder %v141, 1
    %vm147 = vcmp.eq.s32.totalorder %v145, 1
    %v148 = vsel %vm146, %v38, -inf
    %v149 = vsel %vm147, %v39, -inf
    %v150 = vmax.f32 %v148, %v149
    %151 = vmax.xlane.f32.xlu0 %v150
    %v152 = vpop.xlane.xlu0 %151
    %s153 = scalar_lea.vmem [#allocation2], 6
    %v154 = vld [vmem:[%s153] ss:$8 sm:$0x3]
    %vm155 = vcmp.gt.f32.partialorder %v154, 0.5
    %v156 = vsel %vm155, 1, 0
    %v157 = vlaneseq
    %v158 = vshrl.u32 %v157, 7
    %v159 = vsub.s32 0, %v158
    %v160 = vrot.slane %v156, %v159
    %v161 = vlaneseq
    %v162 = vshrl.u32 %v161, 7
    %v163 = vsub.s32 1, %v162
    %v164 = vrot.slane %v156, %v163
    %vm165 = vcmp.eq.s32.totalorder %v160, 1
    %vm166 = vcmp.eq.s32.totalorder %v164, 1
    %v167 = vsel %vm165, %v38, -inf
    %v168 = vsel %vm166, %v39, -inf
    %v169 = vmax.f32 %v167, %v168
    %170 = vmax.xlane.f32.xlu0 %v169
    %v171 = vpop.xlane.xlu0 %170
    %s172 = scalar_lea.vmem [#allocation2], 7
    %v173 = vld [vmem:[%s172] ss:$8 sm:$0x3]
    %vm174 = vcmp.gt.f32.partialorder %v173, 0.5
    %v175 = vsel %vm174, 1, 0
    %v176 = vlaneseq
    %v177 = vshrl.u32 %v176, 7
    %v178 = vsub.s32 0, %v177
    %v179 = vrot.slane %v175, %v178
    %v180 = vlaneseq
    %v181 = vshrl.u32 %v180, 7
    %v182 = vsub.s32 1, %v181
    %v183 = vrot.slane %v175, %v182
    %vm184 = vcmp.eq.s32.totalorder %v179, 1
    %vm185 = vcmp.eq.s32.totalorder %v183, 1
    %v186 = vsel %vm184, %v38, -inf
    %v187 = vsel %vm185, %v39, -inf
    %v188 = vmax.f32 %v186, %v187
    %189 = vmax.xlane.f32.xlu0 %v188
    %v190 = vpop.xlane.xlu0 %189
    %s191 = scalar_lea.vmem [#allocation2], 16
    %v192 = vld [vmem:[%s191] ss:$8 sm:$0x3]
    %vm193 = vcmp.gt.f32.partialorder %v192, 0.5
    %v194 = vsel %vm193, 1, 0
    %v195 = vlaneseq
    %v196 = vshrl.u32 %v195, 7
    %v197 = vsub.s32 0, %v196
    %v198 = vrot.slane %v194, %v197
    %v199 = vlaneseq
    %v200 = vshrl.u32 %v199, 7
    %v201 = vsub.s32 1, %v200
    %v202 = vrot.slane %v194, %v201
    %vm203 = vcmp.eq.s32.totalorder %v198, 1
    %vm204 = vcmp.eq.s32.totalorder %v202, 1
    %v205 = vsel %vm203, %v38, -inf
    %v206 = vsel %vm204, %v39, -inf
    %v207 = vmax.f32 %v205, %v206
    %208 = vmax.xlane.f32.xlu0 %v207
    %v209 = vpop.xlane.xlu0 %208
    %s210 = scalar_lea.vmem [#allocation2], 17
    %v211 = vld [vmem:[%s210] ss:$8 sm:$0x3]
    %vm212 = vcmp.gt.f32.partialorder %v211, 0.5
    %v213 = vsel %vm212, 1, 0
    %v214 = vlaneseq
    %v215 = vshrl.u32 %v214, 7
    %v216 = vsub.s32 0, %v215
    %v217 = vrot.slane %v213, %v216
    %v218 = vlaneseq
    %v219 = vshrl.u32 %v218, 7
    %v220 = vsub.s32 1, %v219
    %v221 = vrot.slane %v213, %v220
    %vm222 = vcmp.eq.s32.totalorder %v217, 1
    %vm223 = vcmp.eq.s32.totalorder %v221, 1
    %v224 = vsel %vm222, %v38, -inf
    %v225 = vsel %vm223, %v39, -inf
    %v226 = vmax.f32 %v224, %v225
    %227 = vmax.xlane.f32.xlu0 %v226
    %v228 = vpop.xlane.xlu0 %227
    %s229 = scalar_lea.vmem [#allocation2], 18
    %v230 = vld [vmem:[%s229] ss:$8 sm:$0x3]
    %vm231 = vcmp.gt.f32.partialorder %v230, 0.5
    %v232 = vsel %vm231, 1, 0
    %v233 = vlaneseq
    %v234 = vshrl.u32 %v233, 7
    %v235 = vsub.s32 0, %v234
    %v236 = vrot.slane %v232, %v235
    %v237 = vlaneseq
    %v238 = vshrl.u32 %v237, 7
    %v239 = vsub.s32 1, %v238
    %v240 = vrot.slane %v232, %v239
    %vm241 = vcmp.eq.s32.totalorder %v236, 1
    %vm242 = vcmp.eq.s32.totalorder %v240, 1
    %v243 = vsel %vm241, %v38, -inf
    %v244 = vsel %vm242, %v39, -inf
    %v245 = vmax.f32 %v243, %v244
    %246 = vmax.xlane.f32.xlu0 %v245
    %v247 = vpop.xlane.xlu0 %246
    %s248 = scalar_lea.vmem [#allocation2], 19
    %v249 = vld [vmem:[%s248] ss:$8 sm:$0x3]
    %vm250 = vcmp.gt.f32.partialorder %v249, 0.5
    %v251 = vsel %vm250, 1, 0
    %v252 = vlaneseq
    %v253 = vshrl.u32 %v252, 7
    %v254 = vsub.s32 0, %v253
    %v255 = vrot.slane %v251, %v254
    %v256 = vlaneseq
    %v257 = vshrl.u32 %v256, 7
    %v258 = vsub.s32 1, %v257
    %v259 = vrot.slane %v251, %v258
    %vm260 = vcmp.eq.s32.totalorder %v255, 1
    %vm261 = vcmp.eq.s32.totalorder %v259, 1
    %v262 = vsel %vm260, %v38, -inf
    %v263 = vsel %vm261, %v39, -inf
    %v264 = vmax.f32 %v262, %v263
    %265 = vmax.xlane.f32.xlu0 %v264
    %v266 = vpop.xlane.xlu0 %265
    %s267 = scalar_lea.vmem [#allocation2], 20
    %v268 = vld [vmem:[%s267] ss:$8 sm:$0x3]
    %vm269 = vcmp.gt.f32.partialorder %v268, 0.5
    %v270 = vsel %vm269, 1, 0
    %v271 = vlaneseq
    %v272 = vshrl.u32 %v271, 7
    %v273 = vsub.s32 0, %v272
    %v274 = vrot.slane %v270, %v273
    %v275 = vlaneseq
    %v276 = vshrl.u32 %v275, 7
    %v277 = vsub.s32 1, %v276
    %v278 = vrot.slane %v270, %v277
    %vm279 = vcmp.eq.s32.totalorder %v274, 1
    %vm280 = vcmp.eq.s32.totalorder %v278, 1
    %v281 = vsel %vm279, %v38, -inf
    %v282 = vsel %vm280, %v39, -inf
    %v283 = vmax.f32 %v281, %v282
    %284 = vmax.xlane.f32.xlu0 %v283
    %v285 = vpop.xlane.xlu0 %284
    %s286 = scalar_lea.vmem [#allocation2], 21
    %v287 = vld [vmem:[%s286] ss:$8 sm:$0x3]
    %vm288 = vcmp.gt.f32.partialorder %v287, 0.5
    %v289 = vsel %vm288, 1, 0
    %v290 = vlaneseq
    %v291 = vshrl.u32 %v290, 7
    %v292 = vsub.s32 0, %v291
    %v293 = vrot.slane %v289, %v292
    %v294 = vlaneseq
    %v295 = vshrl.u32 %v294, 7
    %v296 = vsub.s32 1, %v295
    %v297 = vrot.slane %v289, %v296
    %vm298 = vcmp.eq.s32.totalorder %v293, 1
    %vm299 = vcmp.eq.s32.totalorder %v297, 1
    %v300 = vsel %vm298, %v38, -inf
    %v301 = vsel %vm299, %v39, -inf
    %v302 = vmax.f32 %v300, %v301
    %303 = vmax.xlane.f32.xlu0 %v302
    %v304 = vpop.xlane.xlu0 %303
    %vm305 = vcmask 7168
    %v306 = vsel %vm305, %v57, %v76
    %vm307 = vcmask 15360
    %v308 = vsel %vm307, %v306, %v95
    %vm309 = vcmask 23552
    %v310 = vsel %vm309, %v308, %v114
    %vm311 = vcmask 31744
    %v312 = vsel %vm311, %v310, %v133
    %vm313 = vcmask 39936
    %v314 = vsel %vm313, %v312, %v152
    %vm315 = vcmask 48128
    %v316 = vsel %vm315, %v314, %v171
    %vm317 = vcmask 56320
    %v318 = vsel %vm317, %v316, %v190
    %vm319 = vcmask 64512
    %v320 = vsel %vm319, %v318, %v209
    %vm321 = vcmask 72704
    %v322 = vsel %vm321, %v320, %v228
    %vm323 = vcmask 80896
    %v324 = vsel %vm323, %v322, %v247
    %vm325 = vcmask 89088
    %v326 = vsel %vm325, %v324, %v266
    %vm327 = vcmask 97280
    %v328 = vsel %vm327, %v326, %v285
    %vm329 = vcmask 105472
    %v330 = vsel %vm329, %v328, %v304
    %vm331 = vcmask 113664
    %332 = vst.msk [vmem:[#allocation7] sm:$0xff] %vm331, %v330
    // Predicated region
    $region18: #{tpu_custom_call.1} parent=1 // pred_check
      _
    $region19: #{tpu_custom_call.1} parent=1 // pred_check_branch
      %334 = sbr.rel (0) target = $region21
    $region20: #{tpu_custom_call.1} parent=1 // pred_region
      %s336 = ssub.s32 128, 128
      %337 = vsyncadd [#allocation4], %s336
      %s339 = sshll.u32 [#allocation7], 4
      %s340 = int_to_ptr.vmem [resolvable:$true] %s339
      %342 = dma.vmem_to_hbm [thread:$0]  %s340, 128, %s2, [#allocation4]
    $region21: #{tpu_custom_call.1} parent=1 // pred_fallthru
      _
    // Predicated region
    $region22: #{tpu_custom_call.1} parent=1 // pred_check
      _
    $region23: #{tpu_custom_call.1} parent=1 // pred_check_branch
      %344 = sbr.rel (0) target = $region25
    $region24: #{tpu_custom_call.1} parent=1 // pred_region
      %345 = dma.done [#allocation4], 128
    $region25: #{tpu_custom_call.1} parent=1 // pred_fallthru
      _
    %346 = vsyncpa [#allocation3], 1
    %347 = vsyncpa [#allocation6], 1
    %348 = vsyncpa [#allocation4], 1

</llo_original>
